<compile_context>
chip_gen: v7x
topology: tpu7x:2x2x1
jax: 0.10.0
libtpu: 0.0.40
codegen_flags: <defaults>
</compile_context>

<pallas_src>
import functools

import numpy as np

import jax
import jax.numpy as jnp
from jax.experimental import pallas as pl
from jax.experimental.pallas import tpu as pltpu


# ---------------------------------------------------------------------------
# Tiling policy
# ---------------------------------------------------------------------------

_TARGET_BLOCK_BYTES = 2 << 20   # ~2 MiB/block: >=85% HBM roofline on all gens
_MIN_GRID_STEPS = 8             # pipeline overlap + work for v7x's 2nd TC
_VMEM_LIMIT_BYTES = 32 << 20    # raises v5e's 16 MiB default; default on v6e/v7x


def _pick_rows_per_block(total_rows, row_bytes, itemsize,
                         target_bytes=_TARGET_BLOCK_BYTES,
                         min_steps=_MIN_GRID_STEPS):
    """Return (rows_per_block, padded_rows).

    rows_per_block is a multiple of the dtype's sublane-packing granularity
    (8 rows for 4-byte, 16 for 2-byte, 32 for 1-byte dtypes), capped by both a
    byte target and a minimum number of grid steps.  If no such divisor of
    total_rows exists, padded_rows > total_rows and the wrapper pads.
    """
    gran = max(8, 32 // max(1, itemsize))
    if total_rows <= gran:
        return total_rows, total_rows            # one full-dim block; grid=(1,)
    cap = min(max(1, target_bytes // row_bytes),
              max(1, total_rows // min_steps))
    cap = max(gran, (cap // gran) * gran)
    cap = min(cap, (total_rows // gran) * gran)
    best = None
    r = gran
    while r <= cap:
        if total_rows % r == 0:
            best = r
        r += gran
    if best is not None:
        return best, total_rows
    # No clean multiple-of-gran divisor under the cap: pad rows (rare path).
    tbr = cap
    padded = pl.cdiv(total_rows, tbr) * tbr
    return tbr, padded


# ---------------------------------------------------------------------------
# Kernels
# ---------------------------------------------------------------------------

def _apply_perm(x, *, W, shift_h, shift_w):
    """Cut-swap permutation on a (rows, H*W) block (static shifts).

    shift_h: whole-row roll amount (H cut-swap; always a multiple of W).
    shift_w: per-W-segment roll amount (W cut-swap), 0 <= shift_w < W.
    Note: for H == 1 the two rolls coincide, which is exactly the single-row
    circular roll the W cut-swap degenerates to (still correct).
    """
    L = x.shape[-1]
    if shift_w == 0:
        return pltpu.roll(x, shift=shift_h, axis=1) if shift_h else x
    # Fold the H roll (a multiple of W) into the two W rolls: the within-segment
    # column index is unchanged, so the same periodic lane mask applies and only
    # TWO XLU rolls are needed even for aug==3.
    a = pltpu.roll(x, shift=(shift_h + shift_w) % L, axis=1)
    b = pltpu.roll(x, shift=(shift_h + shift_w - W) % L, axis=1)
    # (1, L) iota broadcast over rows: no block-sized int32 temporary.
    col = jax.lax.broadcasted_iota(jnp.int32, (1, L), 1)
    return jnp.where((col % W) >= shift_w, a, b)


def _perm_kernel(x_ref, o_ref, *, W, shift_h, shift_w):
    o_ref[...] = _apply_perm(x_ref[...], W=W, shift_h=shift_h, shift_w=shift_w)


def _perm_blend_kernel(mask_ref, x_ref, o_ref, *, W, shift_h, shift_w, tbr):
    # mask_ref holds the full (padded_rows, 1) keep-column (resident in VMEM,
    # loaded once); slice out this grid step's rows.
    start = pl.program_id(0) * tbr
    if tbr % 8 == 0:
        start = pl.multiple_of(start, 8)
    keep = mask_ref[pl.ds(start, tbr), :] > 0.0
    x = x_ref[...]
    perm = _apply_perm(x, W=W, shift_h=shift_h, shift_w=shift_w)
    o_ref[...] = jnp.where(keep, x, perm)     # dtype-preserving select


def _copy_kernel(x_ref, o_ref):
    o_ref[...] = x_ref[...]


# ---------------------------------------------------------------------------
# Wrapper
# ---------------------------------------------------------------------------

def _cutperm_pallas(x, do_h, do_v, mask=None, donate_input=False):
    """x: (N, C, H, W); do_h / do_v: static bools; mask: optional (N,) keep
    mask (1 -> keep original sample, 0 -> use permuted sample)."""
    N, C, H, W = x.shape
    L = H * W
    h_mid, w_mid = H // 2, W // 2
    shift_h = ((H - h_mid) * W) % L if do_h else 0
    shift_w = (W - w_mid) % W if do_v else 0
    if shift_h == 0 and shift_w == 0:
        return x                    # identity permutation (blend of x with x)

    rows = N * C
    itemsize = jnp.dtype(x.dtype).itemsize
    x2 = x.reshape(rows, L)         # contiguous merge: free, lane-dense layout
    tbr, padded_rows = _pick_rows_per_block(rows, L * itemsize, itemsize)
    if padded_rows != rows:         # rare: no clean multiple-of-gran divisor
        x2 = jnp.pad(x2, ((0, padded_rows - rows), (0, 0)))
    grid_rows = padded_rows // tbr

    def cp(sem):
        return pltpu.CompilerParams(dimension_semantics=sem,
                                    vmem_limit_bytes=_VMEM_LIMIT_BYTES)

    half = L // 2
    if mask is None and shift_w == 0 and H % 2 == 0 and half % 128 == 0:
        # aug==2 fast path: H cut-swap expressed purely through the input
        # index_map over the two (128-aligned) H-halves -> pure DMA copy.
        out2 = pl.pallas_call(
            _copy_kernel,
            out_shape=jax.ShapeDtypeStruct((padded_rows, L), x.dtype),
            grid_spec=pltpu.PrefetchScalarGridSpec(
                num_scalar_prefetch=0,
                grid=(grid_rows, 2),
                in_specs=[pl.BlockSpec((tbr, half), lambda i, j: (i, 1 - j))],
                out_specs=pl.BlockSpec((tbr, half), lambda i, j: (i, j))),
            compiler_params=cp(("parallel", "parallel")),
            input_output_aliases={0: 0} if donate_input else {},
        )(x2)
    else:
        kern_kw = dict(W=W, shift_h=shift_h, shift_w=shift_w)
        x_spec = pl.BlockSpec((tbr, L), lambda i: (i, 0))
        if mask is None:
            out2 = pl.pallas_call(
                functools.partial(_perm_kernel, **kern_kw),
                out_shape=jax.ShapeDtypeStruct((padded_rows, L), x.dtype),
                grid_spec=pltpu.PrefetchScalarGridSpec(
                    num_scalar_prefetch=0, grid=(grid_rows,),
                    in_specs=[x_spec], out_specs=x_spec),
                compiler_params=cp(("parallel",)),
                input_output_aliases={0: 0} if donate_input else {},
            )(x2)
        else:
            mask_rows = jnp.repeat(jnp.asarray(mask, jnp.float32), C)
            if padded_rows != rows:
                mask_rows = jnp.pad(mask_rows, (0, padded_rows - rows))
            mask_col = mask_rows.reshape(padded_rows, 1)
            out2 = pl.pallas_call(
                functools.partial(_perm_blend_kernel, tbr=tbr, **kern_kw),
                out_shape=jax.ShapeDtypeStruct((padded_rows, L), x.dtype),
                grid_spec=pltpu.PrefetchScalarGridSpec(
                    num_scalar_prefetch=0, grid=(grid_rows,),
                    in_specs=[
                        # full keep-column, constant index_map -> resident,
                        # a single DMA instead of one tiny DMA per grid step
                        pl.BlockSpec((padded_rows, 1), lambda i: (0, 0)),
                        x_spec],
                    out_specs=x_spec),
                compiler_params=cp(("parallel",)),
                input_output_aliases={1: 0} if donate_input else {},
            )(mask_col, x2)

    if padded_rows != rows:
        out2 = out2[:rows]
    return out2.reshape(N, C, H, W)


# ---------------------------------------------------------------------------
# Module
# ---------------------------------------------------------------------------

class CutPerm:
    """JAX/Pallas port of the PyTorch CutPerm module (forward pass)."""

    def __init__(self, max_range=4):
        self.max_range = max_range
        self.prob = 0.5
        self._last_aug = None
        self._last_mask = None

    def __call__(self, x, aug_index=None, rng=None):
        if aug_index is None:
            # The PyTorch module draws aug_index host-side (np.random.randint)
            # and a per-sample bernoulli keep mask.  Keeping both draws on the
            # host gives fresh randomness per call (same statistics as the
            # reference), a statically specialized kernel per augmentation,
            # and no device<->host sync inside the call.
            rng = np.random if rng is None else rng
            aug = int(rng.randint(4))
            mask = (rng.rand(x.shape[0]) < self.prob).astype(np.float32)
            self._last_aug, self._last_mask = aug, mask
            do_h = (aug // 2) == 1
            do_v = (aug % 2) == 1
            return _cutperm_pallas(x, do_h, do_v, mask=mask)
        aug = int(aug_index) % self.max_range
        do_h = (aug // 2) == 1
        do_v = (aug % 2) == 1
        return _cutperm_pallas(x, do_h, do_v, mask=None)


def _cutperm_ref(x, aug_index):
    """Plain-JAX reference mirroring the PyTorch _cutperm."""
    _, _, H, W = x.shape
    h_mid, w_mid = H // 2, W // 2
    jig_h, jig_v = aug_index // 2, aug_index % 2
    if jig_h == 1:
        x = jnp.concatenate([x[:, :, h_mid:, :], x[:, :, :h_mid, :]], axis=2)
    if jig_v == 1:
        x = jnp.concatenate([x[:, :, :, w_mid:], x[:, :, :, :w_mid]], axis=3)
    return x


if __name__ == "__main__":
    key = jax.random.PRNGKey(0)
    mod = CutPerm()

    # Deterministic path: all 4 augmentations at the base shape.
    x = jax.random.normal(key, (2, 4, 16, 16), dtype=jnp.float32)
    for aug_index in range(4):
        out = jax.block_until_ready(mod(x, aug_index=aug_index))
        ref = _cutperm_ref(x, aug_index)
        assert out.shape == x.shape and out.dtype == x.dtype
        assert jnp.array_equal(out, ref), f"mismatch for aug_index={aug_index}"

    # Row-padding path (N*C=12, not divisible by 8) + the H-only pure-DMA path.
    x2 = jax.random.normal(jax.random.PRNGKey(2), (4, 3, 32, 32), jnp.float32)
    for aug_index in (2, 3):
        out = jax.block_until_ready(mod(x2, aug_index=aug_index))
        assert jnp.array_equal(out, _cutperm_ref(x2, aug_index)), \
            f"padded-path mismatch for aug_index={aug_index}"

    # Random path: host-side draws (mirrors the PyTorch module); verify blend.
    rng = np.random.RandomState(1)
    out_rand = jax.block_until_ready(mod(x, aug_index=None, rng=rng))
    aug, mask = mod._last_aug, mod._last_mask
    m = jnp.asarray(mask, jnp.float32).reshape(-1, 1, 1, 1)
    ref_rand = m * x + (1.0 - m) * _cutperm_ref(x, aug)
    assert out_rand.shape == x.shape and out_rand.dtype == x.dtype
    assert jnp.allclose(out_rand, ref_rand), "random-path mismatch"

    print("KERNEL_OK")
</pallas_src>

<mosaic_0001>
module attributes {stable_mosaic.version = 11 : i64} {
  func.func @_perm_kernel(%arg0: i32, %arg1: memref<8x256xf32, #tpu.memory_space<vmem>>, %arg2: memref<8x256xf32, #tpu.memory_space<vmem>>) attributes {dimension_semantics = [#tpu.dimension_semantics<parallel>], iteration_bounds = array<i64: 1>, scalar_prefetch = 0 : i64, scratch_operands = 0 : i64, tpu.core_type = #tpu.core_type<tc>, window_params = [{transform_indices = @transform_0, window_bounds = array<i64: 8, 256>}, {transform_indices = @transform_1, window_bounds = array<i64: 8, 256>}]} {
    %c0 = arith.constant 0 : index
    %c0_0 = arith.constant 0 : index
    %0 = vector.load %arg1[%c0, %c0_0] : memref<8x256xf32, #tpu.memory_space<vmem>>, vector<8x256xf32>
    %c8_i32 = arith.constant 8 : i32
    %1 = tpu.dynamic_rotate %0 by %c8_i32 dim 1 : vector<8x256xf32>, i32 -> vector<8x256xf32>
    %c248_i32 = arith.constant 248 : i32
    %2 = tpu.dynamic_rotate %0 by %c248_i32 dim 1 : vector<8x256xf32>, i32 -> vector<8x256xf32>
    %3 = tpu.iota {dimensions = array<i32: 1>} : vector<1x256xi32>
    %c16_i32 = arith.constant 16 : i32
    %c0_i32 = arith.constant 0 : i32
    %4 = arith.cmpi eq, %c16_i32, %c0_i32 : i32
    %c1_i32 = arith.constant 1 : i32
    %5 = arith.select %4, %c1_i32, %c16_i32 : i32
    %6 = vector.broadcast %5 : i32 to vector<1x256xi32>
    %7 = arith.remsi %3, %6 : vector<1x256xi32>
    %c0_i32_1 = arith.constant 0 : i32
    %8 = vector.broadcast %c0_i32_1 : i32 to vector<1x256xi32>
    %9 = arith.cmpi ne, %7, %8 : vector<1x256xi32>
    %c0_i32_2 = arith.constant 0 : i32
    %10 = vector.broadcast %c0_i32_2 : i32 to vector<1x256xi32>
    %11 = arith.cmpi slt, %7, %10 : vector<1x256xi32>
    %c0_i32_3 = arith.constant 0 : i32
    %12 = arith.cmpi slt, %5, %c0_i32_3 : i32
    %13 = vector.broadcast %12 : i1 to vector<1x256xi1>
    %14 = vector.broadcast %13 : vector<1x256xi1> to vector<1x256xi1>
    %15 = arith.xori %11, %14 : vector<1x256xi1>
    %16 = arith.andi %15, %9 : vector<1x256xi1>
    %17 = vector.broadcast %5 : i32 to vector<1x256xi32>
    %18 = arith.addi %7, %17 : vector<1x256xi32>
    %19 = arith.select %16, %18, %7 : vector<1x256xi1>, vector<1x256xi32>
    %c8_i32_4 = arith.constant 8 : i32
    %20 = vector.broadcast %c8_i32_4 : i32 to vector<1x256xi32>
    %21 = arith.cmpi sge, %19, %20 : vector<1x256xi32>
    %22 = vector.shape_cast %21 : vector<1x256xi1> to vector<1x256xi1>
    %23 = vector.broadcast %22 : vector<1x256xi1> to vector<8x256xi1>
    %24 = arith.select %23, %1, %2 : vector<8x256xi1>, vector<8x256xf32>
    %c0_5 = arith.constant 0 : index
    %c0_6 = arith.constant 0 : index
    %25 = vector.load %arg2[%c0_5, %c0_6] : memref<8x256xf32, #tpu.memory_space<vmem>>, vector<8x256xf32>
    tpu.vector_store %arg2[%c0_5, %c0_6], %24 {strides = array<i32>} : memref<8x256xf32, #tpu.memory_space<vmem>>, vector<8x256xf32>,
    return
  }
  func.func @transform_0(%arg0: i32) -> (i32, i32) {
    %c0_i32 = arith.constant 0 : i32
    %c0_i32_0 = arith.constant 0 : i32
    return %arg0, %c0_i32 : i32, i32
  }
  func.func @transform_1(%arg0: i32) -> (i32, i32) {
    %c0_i32 = arith.constant 0 : i32
    %c0_i32_0 = arith.constant 0 : i32
    return %arg0, %c0_i32 : i32, i32
  }
}

</mosaic_0001>

<llo_original>
// kernel: tpu_custom_call.1
$region0: #{tpu_custom_call.1}
  #allocation0 [shape = 'u32[]', space=smem, size = 0x4, offset = 0x4, fixed_abs, tag = 'smem constant byte address 0x4 - core index']
  #allocation1 [shape = 'u32[144,128]{1,0:T(1,128)}', space=vmem, size = 0x12000, scoped, tag = 'internal scratch']
  %s0 = inlined_call_operand.hbm [shape: f32[8,256], index: 0, kind: input, shape index: {}]
  %s1 = inlined_call_operand.hbm [shape: f32[8,256], index: 1, kind: output, shape index: {}]
  %s2 = sld [smem:[#allocation0]]
  $region18: #{tpu_custom_call.1} parent=0
    _
  %s4 = ssub.s32 1, %s2
  %s5 = scalar_select 0, %s4, %s2
  $region1: #{tpu_custom_call.1} parent=0
    #allocation2 [shape = 'u8[8192]{0}', space=vmem, size = 0x2000, scoped, tag = 'input window, operand 0, single buffered']
    #allocation3 [shape = 's32[1]{0}', space=sflag, size = 0x4, scoped, tag = 'scoped memory for tpu_custom_call.1']
    #allocation4 [shape = 's32[1]{0}', space=sflag, size = 0x4, scoped, tag = 'scoped memory for tpu_custom_call.1']
    #allocation5 [shape = 'u8[8192]{0}', space=vmem, size = 0x2000, scoped, tag = 'output window, operand 0, single buffered']
    %6 = vsyncpa [#allocation3], 0
    %7 = vsyncpa [#allocation4], 0
    // Predicated region
    $region2: #{tpu_custom_call.1} parent=1 // pred_check
      _
    $region3: #{tpu_custom_call.1} parent=1 // pred_check_branch
      %9 = sbr.rel (0) target = $region5
    $region4: #{tpu_custom_call.1} parent=1 // pred_region
      %s11 = ssub.s32 256, 256
      %12 = vsyncadd [#allocation3], %s11
      %s14 = sshll.u32 [#allocation2], 4
      %s15 = int_to_ptr.vmem [resolvable:$true] %s14
      %17 = dma.hbm_to_vmem [thread:$0]  %s0, 256, %s15, [#allocation3]
    $region5: #{tpu_custom_call.1} parent=1 // pred_fallthru
      _
    // Predicated region
    $region6: #{tpu_custom_call.1} parent=1 // pred_check
      _
    $region7: #{tpu_custom_call.1} parent=1 // pred_check_branch
      %19 = sbr.rel (0) target = $region9
    $region8: #{tpu_custom_call.1} parent=1 // pred_region
      %20 = dma.done [#allocation3], 256
    $region9: #{tpu_custom_call.1} parent=1 // pred_fallthru
      _
    %v21 = vld [vmem:[#allocation2] sm:$0xff]
    %v22 = vld [vmem:[#allocation2 + $0x8] sm:$0xff]
    %23 = vrot.lane.b32.xlu0 %v21, 8
    %v24 = vpop.permute.xlu0 %23
    %25 = vrot.lane.b32.xlu0 %v22, 8
    %v26 = vpop.permute.xlu0 %25
    %v27 = vlaneseq
    %v28 = vand.u32 %v27, 127
    %vm29 = vcmp.lt.s32.totalorder %v28, 8
    %v30 = vsel %vm29, %v24, %v26
    %v31 = vsel %vm29, %v26, %v24
    %32 = vrot.lane.b32.xlu0 %v21, 120
    %v33 = vpop.permute.xlu0 %32
    %34 = vrot.lane.b32.xlu0 %v22, 120
    %v35 = vpop.permute.xlu0 %34
    %vm36 = vcmp.lt.s32.totalorder %v28, 120
    %v37 = vsel %vm36, %v33, %v35
    %v38 = vsel %vm36, %v35, %v33
    %v39 = vadd.s32 %v28, 128
    %vm40 = vcmp.lt.s32.totalorder %v28, 0
    %v41 = vsub.s32 0, %v28
    %v42 = vsel %vm40, %v41, %v28
    %v43 = vshrl.u32 %v42, 4
    %v44 = vand.u32 %v42, 15
    %v45 = vsub.s32 0, %v44
    %v46 = vsel %vm40, %v45, %v44
    %vm47 = vcmp.lt.s32.totalorder %v39, 0
    %v48 = vsub.s32 0, %v39
    %v49 = vsel %vm47, %v48, %v39
    %v50 = vshrl.u32 %v49, 4
    %v51 = vand.u32 %v49, 15
    %v52 = vsub.s32 0, %v51
    %v53 = vsel %vm47, %v52, %v51
    %vm54 = vcmp.ne.s32.totalorder %v46, 0
    %vm55 = vcmp.ne.s32.totalorder %v53, 0
    %vm56 = vcmp.lt.s32.totalorder %v46, 0
    %vm57 = vcmp.lt.s32.totalorder %v53, 0
    %vm58 = vmand %vm56, %vm54
    %vm59 = vmand %vm57, %vm55
    %v60 = vadd.s32 %v46, 16
    %v61 = vadd.s32 %v53, 16
    %v62 = vsel %vm58, %v60, %v46
    %v63 = vsel %vm59, %v61, %v53
    %vm64 = vcmp.ge.s32.totalorder %v62, 8
    %vm65 = vcmp.ge.s32.totalorder %v63, 8
    %v66 = vsel %vm64, 1, 0
    %v67 = vsel %vm65, 1, 0
    %vm68 = vcmp.eq.s32.totalorder %v66, 1
    %vm69 = vcmp.eq.s32.totalorder %v67, 1
    %v70 = vsel %vm68, %v31, %v37
    %v71 = vsel %vm69, %v30, %v38
    %72 = vst [vmem:[#allocation5] sm:$0xff] %v70
    %73 = vst [vmem:[#allocation5 + $0x8] sm:$0xff] %v71
    // Predicated region
    $region10: #{tpu_custom_call.1} parent=1 // pred_check
      _
    $region11: #{tpu_custom_call.1} parent=1 // pred_check_branch
      %75 = sbr.rel (0) target = $region13
    $region12: #{tpu_custom_call.1} parent=1 // pred_region
      %s77 = ssub.s32 256, 256
      %78 = vsyncadd [#allocation4], %s77
      %s80 = sshll.u32 [#allocation5], 4
      %s81 = int_to_ptr.vmem [resolvable:$true] %s80
      %83 = dma.vmem_to_hbm [thread:$0]  %s81, 256, %s1, [#allocation4]
    $region13: #{tpu_custom_call.1} parent=1 // pred_fallthru
      _
    // Predicated region
    $region14: #{tpu_custom_call.1} parent=1 // pred_check
      _
    $region15: #{tpu_custom_call.1} parent=1 // pred_check_branch
      %85 = sbr.rel (0) target = $region17
    $region16: #{tpu_custom_call.1} parent=1 // pred_region
      %86 = dma.done [#allocation4], 256
    $region17: #{tpu_custom_call.1} parent=1 // pred_fallthru
      _
    %87 = vsyncpa [#allocation3], 1
    %88 = vsyncpa [#allocation4], 1

</llo_original>
